<compile_context>
chip_gen: v7x
topology: tpu7x:2x2x1
jax: 0.10.0
libtpu: 0.0.40
codegen_flags: <defaults>
</compile_context>

<pallas_src>
import jax
import jax.numpy as jnp
from jax.experimental import pallas as pl
from jax.experimental.pallas import tpu as pltpu


def _round_up(x: int, m: int) -> int:
    return ((x + m - 1) // m) * m


# ----------------------------- Pallas kernel -----------------------------
def _make_ff_kernel(window_size: int, num_classes: int):
    def kernel(tok_ref, embT_ref, w1T_ref, b1_ref, w2_ref, b2_ref, o_ref):
        # tok_ref : (W, TB)    int32  token ids of this batch tile (seq-first, native layout)
        # embT_ref: (E, V)     f32    embedding table^T, VMEM-resident
        # w1T_ref : (W, F, E)  f32    fc1 weight split per window, VMEM-resident
        # b1_ref  : (F, 1)     f32    fc1 bias column, VMEM-resident
        # w2_ref  : (F, 1) f32 if num_classes == 1 else (C, F) f32, VMEM-resident
        # b2_ref  : (1,) f32 in SMEM if num_classes == 1 else (C, 1) f32 in VMEM
        # o_ref   : (C, TB)    f32    lane-dense output tile
        emb_t = embT_ref[...]                                   # (E, V)
        n_vocab = emb_t.shape[1]
        tile_b = tok_ref.shape[1]

        vocab_iota = jax.lax.broadcasted_iota(jnp.int32, (n_vocab, tile_b), 0)

        h_t = None
        for w in range(window_size):                            # static unroll (W is small)
            tok_row = tok_ref[w:w + 1, :]                       # (1, TB) int32
            # Gather-as-matmul: one-hot(tok) selects rows of the embedding table exactly.
            onehot_t = jnp.where(vocab_iota == tok_row, 1.0, 0.0).astype(jnp.float32)  # (V, TB)
            emb_w_t = jnp.dot(emb_t, onehot_t,
                              preferred_element_type=jnp.float32)                      # (E, TB)
            contrib = jnp.dot(w1T_ref[w], emb_w_t,
                              preferred_element_type=jnp.float32)                      # (F, TB)
            h_t = contrib if h_t is None else h_t + contrib     # concat-matmul == per-window sum

        h_t = jnp.maximum(h_t + b1_ref[...], 0.0)               # fc1 bias + ReLU (f32, VPU)

        if num_classes == 1:
            # N=1 head: VPU multiply + sublane reduce instead of a wasted MXU pass; SMEM bias.
            z = jnp.sum(h_t * w2_ref[...], axis=0, keepdims=True) + b2_ref[0]          # (1, TB)
        else:
            z = jnp.dot(w2_ref[...], h_t,
                        preferred_element_type=jnp.float32) + b2_ref[...]              # (C, TB)

        o_ref[...] = jax.nn.sigmoid(z).astype(o_ref.dtype)
    return kernel


# ----------------------------- Host wrapper -----------------------------
def ff_forward_pallas(tokens, embedding, w1, b1, w2, b2, *, block_b=2048):
    """Fused FFModel forward.

    tokens   : (window_size, batch) int32 token ids (same layout the PyTorch forward consumes)
    embedding: (vocab_size + 2, embedding_dim) f32
    w1, b1   : fc1 params in PyTorch layout, (F, W*E) and (F,)
    w2, b2   : fc2 params in PyTorch layout, (C, F) and (C,)
    returns  : (batch, num_classes) f32
    """
    window_size, batch = tokens.shape
    vocab, emb_dim = embedding.shape
    n_feats = w1.shape[0]
    n_classes = w2.shape[0]

    # Batch tiling: batch lives on the 128-wide lane axis of every block.
    tile_b = min(block_b, _round_up(batch, 128))
    batch_pad = _round_up(batch, tile_b)
    if batch_pad != batch:
        tokens = jnp.pad(tokens, ((0, 0), (0, batch_pad - batch)))   # id 0 is a valid row
    grid = (batch_pad // tile_b,)

    # One-time, tiny weight re-layouts (tens of KiB — negligible vs. the batch-sized work).
    emb_t = embedding.T                                                    # (E, V)
    w1_t = w1.reshape(n_feats, window_size, emb_dim).transpose(1, 0, 2)    # (W, F, E)
    b1_c = b1.reshape(n_feats, 1)                                          # (F, 1)

    def resident(shape):
        return pl.BlockSpec(shape, lambda i, _r=len(shape): (0,) * _r)

    in_specs = [
        pl.BlockSpec((window_size, tile_b), lambda i: (0, i)),  # pipelined token-id tile
        resident((emb_dim, vocab)),                             # embedding^T, stays in VMEM
        resident((window_size, n_feats, emb_dim)),              # fc1 weight, stays in VMEM
        resident((n_feats, 1)),                                 # fc1 bias
    ]
    if n_classes == 1:
        w2_arg = w2.T                                           # (F, 1) column for VPU head
        in_specs.append(resident((n_feats, 1)))
        b2_arg = b2.reshape(1)
        in_specs.append(pl.BlockSpec(memory_space=pltpu.MemorySpace.SMEM))
    else:
        w2_arg = w2                                             # (C, F)
        in_specs.append(resident((n_classes, n_feats)))
        b2_arg = b2.reshape(n_classes, 1)
        in_specs.append(resident((n_classes, 1)))

    out = pl.pallas_call(
        _make_ff_kernel(window_size, n_classes),
        out_shape=jax.ShapeDtypeStruct((n_classes, batch_pad), jnp.float32),
        grid=grid,
        in_specs=in_specs,
        out_specs=pl.BlockSpec((n_classes, tile_b), lambda i: (0, i)),
        compiler_params=pltpu.CompilerParams(
            dimension_semantics=("parallel",)),
    )(tokens, emb_t, w1_t, b1_c, w2_arg, b2_arg)

    return out[:, :batch].T                                     # (batch, num_classes)


# ----------------------------- Model wrapper -----------------------------
class FFModelPallas:
    """JAX/Pallas port of the PyTorch FFModel (use_pretrained=False path: random init)."""

    def __init__(self, key, embedding_dim, vocab_size, bottleneck_feats,
                 window_size=3, num_classes=1):
        self.embedding_dim = embedding_dim
        self.window_size = window_size
        self.num_classes = num_classes
        k_emb, k_w1, k_b1, k_w2, k_b2 = jax.random.split(key, 5)

        # nn.Embedding default init: N(0, 1); table has vocab_size + 2 rows.
        self.embedding = jax.random.normal(
            k_emb, (vocab_size + 2, embedding_dim), dtype=jnp.float32)

        # nn.Linear default init: U(-1/sqrt(fan_in), +1/sqrt(fan_in)); PyTorch weight layouts.
        fan1 = embedding_dim * window_size
        lim1 = 1.0 / (fan1 ** 0.5)
        self.w1 = jax.random.uniform(k_w1, (bottleneck_feats, fan1),
                                     minval=-lim1, maxval=lim1, dtype=jnp.float32)
        self.b1 = jax.random.uniform(k_b1, (bottleneck_feats,),
                                     minval=-lim1, maxval=lim1, dtype=jnp.float32)
        lim2 = 1.0 / (bottleneck_feats ** 0.5)
        self.w2 = jax.random.uniform(k_w2, (num_classes, bottleneck_feats),
                                     minval=-lim2, maxval=lim2, dtype=jnp.float32)
        self.b2 = jax.random.uniform(k_b2, (num_classes,),
                                     minval=-lim2, maxval=lim2, dtype=jnp.float32)

    def __call__(self, x_tokens, *, block_b=2048):
        # x_tokens: (window_size, batch) integer ids, like the PyTorch forward's input.
        return ff_forward_pallas(x_tokens, self.embedding, self.w1, self.b1,
                                 self.w2, self.b2, block_b=block_b)


# ----------------------------- Reference (pure JAX, torch-faithful) -----------------------------
def ff_forward_ref(model, x_tokens):
    emb = jnp.take(model.embedding, x_tokens, axis=0)             # (W, B, E)
    batch = emb.shape[1]
    x = jnp.transpose(emb, (1, 0, 2)).reshape(batch, -1)          # (B, W*E)
    h = jnp.maximum(x @ model.w1.T + model.b1, 0.0)
    return jax.nn.sigmoid(h @ model.w2.T + model.b2)


if __name__ == "__main__":
    embedding_dim = 32
    vocab_size = 100
    bottleneck_feats = 64
    window_size = 3
    num_classes = 1
    batch = 8

    key = jax.random.PRNGKey(0)
    k_params, k_tokens = jax.random.split(key)

    model = FFModelPallas(k_params, embedding_dim, vocab_size,
                          bottleneck_feats, window_size, num_classes)

    # Token ids in [0, vocab_size + 2), shape (window_size, batch) — seq-first like the module.
    x_tokens = jax.random.randint(k_tokens, (window_size, batch),
                                  0, vocab_size + 2, dtype=jnp.int32)

    out = jax.block_until_ready(model(x_tokens))
    assert out.shape == (batch, num_classes), out.shape

    ref = jax.block_until_ready(ff_forward_ref(model, x_tokens))
    # XLA's default f32 matmul precision on TPU uses reduced-precision MXU passes, and the kernel
    # groups the fc1 contraction per window, so allow a small tolerance; any structural bug
    # (wrong gather / weight slice) would produce errors ~0.1+.
    assert jnp.allclose(out, ref, atol=1e-2, rtol=0.0), float(jnp.max(jnp.abs(out - ref)))

    print("KERNEL_OK")
</pallas_src>

<mosaic_0001>
module attributes {stable_mosaic.version = 11 : i64} {
  func.func @kernel(%arg0: i32, %arg1: memref<3x128xi32, #tpu.memory_space<vmem>>, %arg2: memref<32x102xf32, #tpu.memory_space<vmem>>, %arg3: memref<3x64x32xf32, #tpu.memory_space<vmem>>, %arg4: memref<64x1xf32, #tpu.memory_space<vmem>>, %arg5: memref<64x1xf32, #tpu.memory_space<vmem>>, %arg6: memref<1xf32, #tpu.memory_space<smem>>, %arg7: memref<1x128xf32, #tpu.memory_space<vmem>>) attributes {dimension_semantics = [#tpu.dimension_semantics<parallel>], iteration_bounds = array<i64: 1>, scalar_prefetch = 0 : i64, scratch_operands = 0 : i64, tpu.core_type = #tpu.core_type<tc>, window_params = [{transform_indices = @transform_0, window_bounds = array<i64: 3, 128>}, {pipeline_mode = #tpu.pipeline_mode<synchronous>, transform_indices = @transform_1, window_bounds = array<i64: 32, 102>}, {pipeline_mode = #tpu.pipeline_mode<synchronous>, transform_indices = @transform_2, window_bounds = array<i64: 3, 64, 32>}, {pipeline_mode = #tpu.pipeline_mode<synchronous>, transform_indices = @transform_3, window_bounds = array<i64: 64, 1>}, {pipeline_mode = #tpu.pipeline_mode<synchronous>, transform_indices = @transform_4, window_bounds = array<i64: 64, 1>}, {transform_indices = @transform_5, window_bounds = array<i64: 1>}, {transform_indices = @transform_6, window_bounds = array<i64: 1, 128>}]} {
    %c0 = arith.constant 0 : index
    %c0_0 = arith.constant 0 : index
    %0 = vector.load %arg2[%c0, %c0_0] : memref<32x102xf32, #tpu.memory_space<vmem>>, vector<32x102xf32>
    %1 = tpu.iota {dimensions = array<i32: 0>} : vector<102x128xi32>
    %c0_1 = arith.constant 0 : index
    %c0_2 = arith.constant 0 : index
    %2 = vector.load %arg1[%c0_1, %c0_2] : memref<3x128xi32, #tpu.memory_space<vmem>>, vector<1x128xi32>
    %3 = vector.broadcast %2 : vector<1x128xi32> to vector<102x128xi32>
    %4 = arith.cmpi eq, %1, %3 : vector<102x128xi32>
    %cst = arith.constant 1.000000e+00 : f32
    %cst_3 = arith.constant 0.000000e+00 : f32
    %5 = vector.broadcast %cst : f32 to vector<102x128xf32>
    %6 = vector.broadcast %cst_3 : f32 to vector<102x128xf32>
    %7 = arith.select %4, %5, %6 : vector<102x128xi1>, vector<102x128xf32>
    %cst_4 = arith.constant dense<0.000000e+00> : vector<32x128xf32>
    %8 = tpu.matmul %0, %7, %cst_4 {dimension_numbers = #tpu.dot_dimension_numbers<[1], [0], [0], [1], [0, 0, 1, 1], [], []>} : vector<32x102xf32>, vector<102x128xf32>, vector<32x128xf32> -> vector<32x128xf32>
    %c0_5 = arith.constant 0 : index
    %c0_6 = arith.constant 0 : index
    %c0_7 = arith.constant 0 : index
    %9 = vector.load %arg3[%c0_5, %c0_6, %c0_7] : memref<3x64x32xf32, #tpu.memory_space<vmem>>, vector<1x64x32xf32>
    %10 = vector.shape_cast %9 : vector<1x64x32xf32> to vector<64x32xf32>
    %cst_8 = arith.constant dense<0.000000e+00> : vector<64x128xf32>
    %11 = tpu.matmul %10, %8, %cst_8 {dimension_numbers = #tpu.dot_dimension_numbers<[1], [0], [0], [1], [0, 0, 1, 1], [], []>} : vector<64x32xf32>, vector<32x128xf32>, vector<64x128xf32> -> vector<64x128xf32>
    %c1 = arith.constant 1 : index
    %c0_9 = arith.constant 0 : index
    %12 = vector.load %arg1[%c1, %c0_9] : memref<3x128xi32, #tpu.memory_space<vmem>>, vector<1x128xi32>
    %13 = vector.broadcast %12 : vector<1x128xi32> to vector<102x128xi32>
    %14 = arith.cmpi eq, %1, %13 : vector<102x128xi32>
    %cst_10 = arith.constant 1.000000e+00 : f32
    %cst_11 = arith.constant 0.000000e+00 : f32
    %15 = vector.broadcast %cst_10 : f32 to vector<102x128xf32>
    %16 = vector.broadcast %cst_11 : f32 to vector<102x128xf32>
    %17 = arith.select %14, %15, %16 : vector<102x128xi1>, vector<102x128xf32>
    %cst_12 = arith.constant dense<0.000000e+00> : vector<32x128xf32>
    %18 = tpu.matmul %0, %17, %cst_12 {dimension_numbers = #tpu.dot_dimension_numbers<[1], [0], [0], [1], [0, 0, 1, 1], [], []>} : vector<32x102xf32>, vector<102x128xf32>, vector<32x128xf32> -> vector<32x128xf32>
    %c1_13 = arith.constant 1 : index
    %c0_14 = arith.constant 0 : index
    %c0_15 = arith.constant 0 : index
    %19 = vector.load %arg3[%c1_13, %c0_14, %c0_15] : memref<3x64x32xf32, #tpu.memory_space<vmem>>, vector<1x64x32xf32>
    %20 = vector.shape_cast %19 : vector<1x64x32xf32> to vector<64x32xf32>
    %cst_16 = arith.constant dense<0.000000e+00> : vector<64x128xf32>
    %21 = tpu.matmul %20, %18, %cst_16 {dimension_numbers = #tpu.dot_dimension_numbers<[1], [0], [0], [1], [0, 0, 1, 1], [], []>} : vector<64x32xf32>, vector<32x128xf32>, vector<64x128xf32> -> vector<64x128xf32>
    %22 = arith.addf %11, %21 : vector<64x128xf32>
    %c2 = arith.constant 2 : index
    %c0_17 = arith.constant 0 : index
    %23 = vector.load %arg1[%c2, %c0_17] : memref<3x128xi32, #tpu.memory_space<vmem>>, vector<1x128xi32>
    %24 = vector.broadcast %23 : vector<1x128xi32> to vector<102x128xi32>
    %25 = arith.cmpi eq, %1, %24 : vector<102x128xi32>
    %cst_18 = arith.constant 1.000000e+00 : f32
    %cst_19 = arith.constant 0.000000e+00 : f32
    %26 = vector.broadcast %cst_18 : f32 to vector<102x128xf32>
    %27 = vector.broadcast %cst_19 : f32 to vector<102x128xf32>
    %28 = arith.select %25, %26, %27 : vector<102x128xi1>, vector<102x128xf32>
    %cst_20 = arith.constant dense<0.000000e+00> : vector<32x128xf32>
    %29 = tpu.matmul %0, %28, %cst_20 {dimension_numbers = #tpu.dot_dimension_numbers<[1], [0], [0], [1], [0, 0, 1, 1], [], []>} : vector<32x102xf32>, vector<102x128xf32>, vector<32x128xf32> -> vector<32x128xf32>
    %c2_21 = arith.constant 2 : index
    %c0_22 = arith.constant 0 : index
    %c0_23 = arith.constant 0 : index
    %30 = vector.load %arg3[%c2_21, %c0_22, %c0_23] : memref<3x64x32xf32, #tpu.memory_space<vmem>>, vector<1x64x32xf32>
    %31 = vector.shape_cast %30 : vector<1x64x32xf32> to vector<64x32xf32>
    %cst_24 = arith.constant dense<0.000000e+00> : vector<64x128xf32>
    %32 = tpu.matmul %31, %29, %cst_24 {dimension_numbers = #tpu.dot_dimension_numbers<[1], [0], [0], [1], [0, 0, 1, 1], [], []>} : vector<64x32xf32>, vector<32x128xf32>, vector<64x128xf32> -> vector<64x128xf32>
    %33 = arith.addf %22, %32 : vector<64x128xf32>
    %c0_25 = arith.constant 0 : index
    %c0_26 = arith.constant 0 : index
    %34 = vector.load %arg4[%c0_25, %c0_26] : memref<64x1xf32, #tpu.memory_space<vmem>>, vector<64x1xf32>
    %35 = vector.broadcast %34 : vector<64x1xf32> to vector<64x128xf32>
    %36 = arith.addf %33, %35 : vector<64x128xf32>
    %cst_27 = arith.constant 0.000000e+00 : f32
    %37 = vector.broadcast %cst_27 : f32 to vector<64x128xf32>
    %38 = arith.maximumf %36, %37 : vector<64x128xf32>
    %c0_28 = arith.constant 0 : index
    %c0_29 = arith.constant 0 : index
    %39 = vector.load %arg5[%c0_28, %c0_29] : memref<64x1xf32, #tpu.memory_space<vmem>>, vector<64x1xf32>
    %40 = vector.broadcast %39 : vector<64x1xf32> to vector<64x128xf32>
    %41 = arith.mulf %38, %40 : vector<64x128xf32>
    %cst_30 = arith.constant dense<0.000000e+00> : vector<128xf32>
    %42 = vector.multi_reduction <add>, %41, %cst_30 [0] : vector<64x128xf32> to vector<128xf32>
    %43 = vector.shape_cast %42 : vector<128xf32> to vector<1x128xf32>
    %c0_31 = arith.constant 0 : index
    %44 = memref.load %arg6[%c0_31] : memref<1xf32, #tpu.memory_space<smem>>
    %45 = vector.broadcast %44 : f32 to vector<1x128xf32>
    %46 = arith.addf %43, %45 : vector<1x128xf32>
    %47 = arith.negf %46 : vector<1x128xf32>
    %48 = math.exp %47 : vector<1x128xf32>
    %cst_32 = arith.constant 1.000000e+00 : f32
    %49 = vector.broadcast %cst_32 : f32 to vector<1x128xf32>
    %50 = arith.addf %49, %48 : vector<1x128xf32>
    %51 = arith.divf %49, %50 : vector<1x128xf32>
    %c0_33 = arith.constant 0 : index
    %c0_34 = arith.constant 0 : index
    %52 = vector.load %arg7[%c0_33, %c0_34] : memref<1x128xf32, #tpu.memory_space<vmem>>, vector<1x128xf32>
    tpu.vector_store %arg7[%c0_33, %c0_34], %51 {strides = array<i32>} : memref<1x128xf32, #tpu.memory_space<vmem>>, vector<1x128xf32>,
    return
  }
  func.func @transform_0(%arg0: i32) -> (i32, i32) {
    %c0_i32 = arith.constant 0 : i32
    %c0_i32_0 = arith.constant 0 : i32
    return %c0_i32, %arg0 : i32, i32
  }
  func.func @transform_1(%arg0: i32) -> (i32, i32) {
    %c0_i32 = arith.constant 0 : i32
    %c0_i32_0 = arith.constant 0 : i32
    %c0_i32_1 = arith.constant 0 : i32
    return %c0_i32, %c0_i32_0 : i32, i32
  }
  func.func @transform_2(%arg0: i32) -> (i32, i32, i32) {
    %c0_i32 = arith.constant 0 : i32
    %c0_i32_0 = arith.constant 0 : i32
    %c0_i32_1 = arith.constant 0 : i32
    %c0_i32_2 = arith.constant 0 : i32
    return %c0_i32, %c0_i32_0, %c0_i32_1 : i32, i32, i32
  }
  func.func @transform_3(%arg0: i32) -> (i32, i32) {
    %c0_i32 = arith.constant 0 : i32
    %c0_i32_0 = arith.constant 0 : i32
    %c0_i32_1 = arith.constant 0 : i32
    return %c0_i32, %c0_i32_0 : i32, i32
  }
  func.func @transform_4(%arg0: i32) -> (i32, i32) {
    %c0_i32 = arith.constant 0 : i32
    %c0_i32_0 = arith.constant 0 : i32
    %c0_i32_1 = arith.constant 0 : i32
    return %c0_i32, %c0_i32_0 : i32, i32
  }
  func.func @transform_5(%arg0: i32) -> i32 {
    %c0_i32 = arith.constant 0 : i32
    %c0_i32_0 = arith.constant 0 : i32
    return %c0_i32 : i32
  }
  func.func @transform_6(%arg0: i32) -> (i32, i32) {
    %c0_i32 = arith.constant 0 : i32
    %c0_i32_0 = arith.constant 0 : i32
    return %c0_i32, %arg0 : i32, i32
  }
}

</mosaic_0001>

<llo_original>
// kernel: tpu_custom_call.1
$region0: #{tpu_custom_call.1}
  #allocation0 [shape = 'u32[]', space=smem, size = 0x4, offset = 0x4, fixed_abs, tag = 'smem constant byte address 0x4 - core index']
  #allocation1 [shape = 'u32[144,128]{1,0:T(1,128)}', space=vmem, size = 0x12000, scoped, tag = 'internal scratch']
  #allocation2 [shape = 'f32[1]{0:T(128)S(6)}', space=smem, size = 0x200, scoped, tag = 'scoped memory for tpu_custom_call.1']
  %s0 = inlined_call_operand.vmem [shape: s32[3,128], index: 0, kind: input, shape index: {}]
  %s1 = inlined_call_operand.vmem [shape: f32[32,102], index: 1, kind: input, shape index: {}]
  %s2 = inlined_call_operand.vmem [shape: f32[3,64,32], index: 2, kind: input, shape index: {}]
  %s3 = inlined_call_operand.vmem [shape: f32[64,1], index: 3, kind: input, shape index: {}]
  %s4 = inlined_call_operand.vmem [shape: f32[64,1], index: 4, kind: input, shape index: {}]
  %s5 = inlined_call_operand.<no memory space> [shape: f32[1], index: 5, kind: input, shape index: {}]
  %s6 = inlined_call_operand.hbm [shape: f32[1,128], index: 6, kind: output, shape index: {}]
  %s7 = sld [smem:[#allocation0]]
  $region34: #{tpu_custom_call.1} parent=0
    _
  %s9 = ssub.s32 1, %s7
  %s10 = scalar_select 0, %s9, %s7
  %11 = sst [smem:[#allocation2]] %s5
  $region1: #{tpu_custom_call.1} parent=0
    #allocation3 [shape = 'u8[512]{0}', space=vmem, size = 0x400, scoped, tag = 'output window, operand 0, single buffered']
    #allocation4 [shape = 's32[1]{0}', space=sflag, size = 0x4, scoped, tag = 'scoped memory for tpu_custom_call.1']
    %12 = vsyncpa [#allocation4], 0
    // Predicated region
    $region2: #{tpu_custom_call.1} parent=1 // pred_check
      _
    $region3: #{tpu_custom_call.1} parent=1 // pred_check_branch
      %14 = sbr.rel (0) target = $region5
    $region4: #{tpu_custom_call.1} parent=1 // pred_region
      _
    $region5: #{tpu_custom_call.1} parent=1 // pred_fallthru
      _
    // Predicated region
    $region6: #{tpu_custom_call.1} parent=1 // pred_check
      _
    $region7: #{tpu_custom_call.1} parent=1 // pred_check_branch
      %16 = sbr.rel (0) target = $region9
    $region8: #{tpu_custom_call.1} parent=1 // pred_region
      _
    $region9: #{tpu_custom_call.1} parent=1 // pred_fallthru
      _
    // Predicated region
    $region10: #{tpu_custom_call.1} parent=1 // pred_check
      _
    $region11: #{tpu_custom_call.1} parent=1 // pred_check_branch
      %18 = sbr.rel (0) target = $region13
    $region12: #{tpu_custom_call.1} parent=1 // pred_region
      _
    $region13: #{tpu_custom_call.1} parent=1 // pred_fallthru
      _
    // Predicated region
    $region14: #{tpu_custom_call.1} parent=1 // pred_check
      _
    $region15: #{tpu_custom_call.1} parent=1 // pred_check_branch
      %20 = sbr.rel (0) target = $region17
    $region16: #{tpu_custom_call.1} parent=1 // pred_region
      _
    $region17: #{tpu_custom_call.1} parent=1 // pred_fallthru
      _
    // Predicated region
    $region18: #{tpu_custom_call.1} parent=1 // pred_check
      _
    $region19: #{tpu_custom_call.1} parent=1 // pred_check_branch
      %22 = sbr.rel (0) target = $region21
    $region20: #{tpu_custom_call.1} parent=1 // pred_region
      _
    $region21: #{tpu_custom_call.1} parent=1 // pred_fallthru
      _
    // Predicated region
    $region22: #{tpu_custom_call.1} parent=1 // pred_check
      _
    $region23: #{tpu_custom_call.1} parent=1 // pred_check_branch
      %24 = sbr.rel (0) target = $region25
    $region24: #{tpu_custom_call.1} parent=1 // pred_region
      _
    $region25: #{tpu_custom_call.1} parent=1 // pred_fallthru
      _
    %v25 = vld [vmem:[%s1] sm:$0xff]
    %v26 = vld [vmem:[%s1 + $0x8] sm:$0xff]
    %v27 = vld [vmem:[%s1 + $0x10] sm:$0xff]
    %v28 = vld [vmem:[%s1 + $0x18] sm:$0xff]
    %v29 = vlaneseq
    %v30 = vshrl.u32 %v29, 7
    %v31 = vadd.s32 %v30, 8
    %v32 = vadd.s32 %v30, 16
    %v33 = vadd.s32 %v30, 24
    %v34 = vadd.s32 %v30, 32
    %v35 = vadd.s32 %v30, 40
    %v36 = vadd.s32 %v30, 48
    %v37 = vadd.s32 %v30, 56
    %v38 = vadd.s32 %v30, 64
    %v39 = vadd.s32 %v30, 72
    %v40 = vadd.s32 %v30, 80
    %v41 = vadd.s32 %v30, 88
    %v42 = vadd.s32 %v30, 96
    %v43 = vld [vmem:[%s0] sm:$0x1]
    %v44 = vlaneseq
    %v45 = vshrl.u32 %v44, 7
    %v46 = vsub.s32 0, %v45
    %v47 = vrot.slane %v43, %v46
    %vm48 = vcmp.eq.s32.totalorder %v30, %v47
    %vm49 = vcmp.eq.s32.totalorder %v31, %v47
    %vm50 = vcmp.eq.s32.totalorder %v32, %v47
    %vm51 = vcmp.eq.s32.totalorder %v33, %v47
    %vm52 = vcmp.eq.s32.totalorder %v34, %v47
    %vm53 = vcmp.eq.s32.totalorder %v35, %v47
    %vm54 = vcmp.eq.s32.totalorder %v36, %v47
    %vm55 = vcmp.eq.s32.totalorder %v37, %v47
    %vm56 = vcmp.eq.s32.totalorder %v38, %v47
    %vm57 = vcmp.eq.s32.totalorder %v39, %v47
    %vm58 = vcmp.eq.s32.totalorder %v40, %v47
    %vm59 = vcmp.eq.s32.totalorder %v41, %v47
    %vm60 = vcmp.eq.s32.totalorder %v42, %v47
    %v61 = vsel %vm48, 1.0, 0.0
    %v62 = vsel %vm49, 1.0, 0.0
    %v63 = vsel %vm50, 1.0, 0.0
    %v64 = vsel %vm51, 1.0, 0.0
    %v65 = vsel %vm52, 1.0, 0.0
    %v66 = vsel %vm53, 1.0, 0.0
    %v67 = vsel %vm54, 1.0, 0.0
    %v68 = vsel %vm55, 1.0, 0.0
    %v69 = vsel %vm56, 1.0, 0.0
    %v70 = vsel %vm57, 1.0, 0.0
    %v71 = vsel %vm58, 1.0, 0.0
    %v72 = vsel %vm59, 1.0, 0.0
    %v73 = vsel %vm60, 1.0, 0.0
    %vm74 = vcmask 834560
    %v76 = vsel %vm74, %v25, 0
    %v79 = vsel %vm74, %v26, 0
    %v82 = vsel %vm74, %v27, 0
    %v85 = vsel %vm74, %v28, 0
    %vm87 = vcmask 1045504
    %v89 = vsel %vm87, %v73, 0
    %91 = vmatprep.subr.mxu0 0.0
    %92 = vmatpush1.msra.mxu0 %v61
    %93 = vmatprep.subr.mxu0 0.0
    %94 = vmatpush1.msra.mxu0 %v62
    %95 = vmatprep.subr.mxu0 0.0
    %96 = vmatpush1.msra.mxu0 %v63
    %97 = vmatprep.subr.mxu0 0.0
    %98 = vmatpush1.msra.mxu0 %v64
    %99 = vmatprep.subr.mxu0 0.0
    %100 = vmatpush1.msra.mxu0 %v65
    %101 = vmatprep.subr.mxu0 0.0
    %102 = vmatpush1.msra.mxu0 %v66
    %103 = vmatprep.subr.mxu0 0.0
    %104 = vmatpush1.msra.mxu0 %v67
    %105 = vmatprep.subr.mxu0 0.0
    %106 = vmatpush1.msra.mxu0 %v68
    %107 = vmatprep.subr.mxu0 0.0
    %108 = vmatpush1.msra.mxu0 %v69
    %109 = vmatprep.subr.mxu0 0.0
    %110 = vmatpush1.msra.mxu0 %v70
    %111 = vmatprep.subr.mxu0 0.0
    %112 = vmatpush1.msra.mxu0 %v71
    %113 = vmatprep.subr.mxu0 0.0
    %114 = vmatpush1.msra.mxu0 %v72
    %115 = vmatprep.subr.mxu0 0.0
    %116 = vmatpush1.msra.mxu0 %v89
    %117 = vmatprep.subr.mxu0 0.0
    %118 = vmatpush1.msra.mxu0 0.0
    %119 = vmatprep.subr.mxu0 0.0
    %120 = vmatpush1.msra.mxu0 0.0
    %121 = vmatprep.subr.mxu0 0.0
    %122 = vmatpush1.msra.mxu0 0.0
    %123 = vmatprep.subr.mxu0 0.0
    %124 = vmatpush1.msra.mxu0 0.0
    %125 = vmatprep.subr.mxu0 0.0
    %126 = vmatpush1.msra.mxu0 0.0
    %127 = vmatprep.subr.mxu0 0.0
    %128 = vmatpush1.msra.mxu0 0.0
    %129 = vmatprep.subr.mxu0 0.0
    %130 = vmatpush1.msra.mxu0 0.0
    %131 = vmatprep.subr.mxu0 0.0
    %132 = vmatpush1.msra.mxu0 0.0
    %133 = vmatprep.subr.mxu0 0.0
    %134 = vmatpush1.msra.mxu0 0.0
    %135 = vmatprep.subr.mxu0 0.0
    %136 = vmatpush1.msra.mxu0 0.0
    %137 = vmatprep.subr.mxu0 0.0
    %138 = vmatpush1.msra.mxu0 0.0
    %139 = vmatprep.subr.mxu0 0.0
    %140 = vmatpush1.msra.mxu0 0.0
    %141 = vmatprep.subr.mxu0 0.0
    %142 = vmatpush1.msra.mxu0 0.0
    %143 = vmatprep.subr.mxu0 0.0
    %144 = vmatpush1.msra.mxu0 0.0
    %145 = vmatprep.subr.mxu0 0.0
    %146 = vmatpush1.msra.mxu0 0.0
    %147 = vmatprep.subr.mxu0 0.0
    %148 = vmatpush1.msra.mxu0 0.0
    %149 = vmatprep.subr.mxu0 0.0
    %150 = vmatpush1.msra.mxu0 0.0
    %151 = vmatprep.subr.mxu0 0.0
    %152 = vmatpush1.msra.mxu0 0.0
    %153 = vmatprep.subr.mxu0 0.0
    %154 = vmatpush1.msra.mxu0 0.0
    %155 = vmatprep.mubr.f32.mxu0 0.0
    %156 = vmatmul.mubr.f32.gmra.mrb[0].mxu0 %v76
    %v157 = vpop.f32.mrb[0].mxu0
    %v158 = vadd.f32 0.0, %v157
    %v159 = vpop.f32.mrb[0].mxu0
    %160 = vmatprep.mubr.f32.mxu0 0.0
    %161 = vmatmul.mubr.f32.gmra.mrb[0].mxu0 %v79
    %v162 = vpop.f32.mrb[0].mxu0
    %v163 = vadd.f32 0.0, %v162
    %v164 = vpop.f32.mrb[0].mxu0
    %165 = vmatprep.mubr.f32.mxu0 0.0
    %166 = vmatmul.mubr.f32.gmra.mrb[0].mxu0 %v82
    %v167 = vpop.f32.mrb[0].mxu0
    %v168 = vadd.f32 0.0, %v167
    %v169 = vpop.f32.mrb[0].mxu0
    %170 = vmatprep.mubr.f32.mxu0 0.0
    %171 = vmatmul.mubr.f32.gmra.mrb[0].mxu0 %v85
    %v172 = vpop.f32.mrb[0].mxu0
    %v173 = vadd.f32 0.0, %v172
    %v174 = vpop.f32.mrb[0].mxu0
    %175 = vdwg.mxu0
    %v176 = vld [vmem:[%s2] sm:$0xff]
    %v177 = vld [vmem:[%s2 + $0x8] sm:$0xff]
    %v178 = vld [vmem:[%s2 + $0x10] sm:$0xff]
    %v179 = vld [vmem:[%s2 + $0x18] sm:$0xff]
    %v180 = vld [vmem:[%s2 + $0x20] sm:$0xff]
    %v181 = vld [vmem:[%s2 + $0x28] sm:$0xff]
    %v182 = vld [vmem:[%s2 + $0x30] sm:$0xff]
    %v183 = vld [vmem:[%s2 + $0x38] sm:$0xff]
    %v184 = vld [vmem:[%s0 + $0x1] sm:$0x1]
    %v185 = vlaneseq
    %v186 = vshrl.u32 %v185, 7
    %v187 = vsub.s32 0, %v186
    %v188 = vrot.slane %v184, %v187
    %vm189 = vcmp.eq.s32.totalorder %v30, %v188
    %vm190 = vcmp.eq.s32.totalorder %v31, %v188
    %vm191 = vcmp.eq.s32.totalorder %v32, %v188
    %vm192 = vcmp.eq.s32.totalorder %v33, %v188
    %vm193 = vcmp.eq.s32.totalorder %v34, %v188
    %vm194 = vcmp.eq.s32.totalorder %v35, %v188
    %vm195 = vcmp.eq.s32.totalorder %v36, %v188
    %vm196 = vcmp.eq.s32.totalorder %v37, %v188
    %vm197 = vcmp.eq.s32.totalorder %v38, %v188
    %vm198 = vcmp.eq.s32.totalorder %v39, %v188
    %vm199 = vcmp.eq.s32.totalorder %v40, %v188
    %vm200 = vcmp.eq.s32.totalorder %v41, %v188
    %vm201 = vcmp.eq.s32.totalorder %v42, %v188
    %v202 = vsel %vm189, 1.0, 0.0
    %v203 = vsel %vm190, 1.0, 0.0
    %v204 = vsel %vm191, 1.0, 0.0
    %v205 = vsel %vm192, 1.0, 0.0
    %v206 = vsel %vm193, 1.0, 0.0
    %v207 = vsel %vm194, 1.0, 0.0
    %v208 = vsel %vm195, 1.0, 0.0
    %v209 = vsel %vm196, 1.0, 0.0
    %v210 = vsel %vm197, 1.0, 0.0
    %v211 = vsel %vm198, 1.0, 0.0
    %v212 = vsel %vm199, 1.0, 0.0
    %v213 = vsel %vm200, 1.0, 0.0
    %v214 = vsel %vm201, 1.0, 0.0
    %v216 = vsel %vm87, %v214, 0
    %218 = vmatprep.subr.mxu0 0.0
    %219 = vmatpush1.msra.mxu0 %v202
    %220 = vmatprep.subr.mxu0 0.0
    %221 = vmatpush1.msra.mxu0 %v203
    %222 = vmatprep.subr.mxu0 0.0
    %223 = vmatpush1.msra.mxu0 %v204
    %224 = vmatprep.subr.mxu0 0.0
    %225 = vmatpush1.msra.mxu0 %v205
    %226 = vmatprep.subr.mxu0 0.0
    %227 = vmatpush1.msra.mxu0 %v206
    %228 = vmatprep.subr.mxu0 0.0
    %229 = vmatpush1.msra.mxu0 %v207
    %230 = vmatprep.subr.mxu0 0.0
    %231 = vmatpush1.msra.mxu0 %v208
    %232 = vmatprep.subr.mxu0 0.0
    %233 = vmatpush1.msra.mxu0 %v209
    %234 = vmatprep.subr.mxu0 0.0
    %235 = vmatpush1.msra.mxu0 %v210
    %236 = vmatprep.subr.mxu0 0.0
    %237 = vmatpush1.msra.mxu0 %v211
    %238 = vmatprep.subr.mxu0 0.0
    %239 = vmatpush1.msra.mxu0 %v212
    %240 = vmatprep.subr.mxu0 0.0
    %241 = vmatpush1.msra.mxu0 %v213
    %242 = vmatprep.subr.mxu0 0.0
    %243 = vmatpush1.msra.mxu0 %v216
    %244 = vmatprep.subr.mxu0 0.0
    %245 = vmatpush1.msra.mxu0 0.0
    %246 = vmatprep.subr.mxu0 0.0
    %247 = vmatpush1.msra.mxu0 0.0
    %248 = vmatprep.subr.mxu0 0.0
    %249 = vmatpush1.msra.mxu0 0.0
    %250 = vmatprep.subr.mxu0 0.0
    %251 = vmatpush1.msra.mxu0 0.0
    %252 = vmatprep.subr.mxu0 0.0
    %253 = vmatpush1.msra.mxu0 0.0
    %254 = vmatprep.subr.mxu0 0.0
    %255 = vmatpush1.msra.mxu0 0.0
    %256 = vmatprep.subr.mxu0 0.0
    %257 = vmatpush1.msra.mxu0 0.0
    %258 = vmatprep.subr.mxu0 0.0
    %259 = vmatpush1.msra.mxu0 0.0
    %260 = vmatprep.subr.mxu0 0.0
    %261 = vmatpush1.msra.mxu0 0.0
    %262 = vmatprep.subr.mxu0 0.0
    %263 = vmatpush1.msra.mxu0 0.0
    %264 = vmatprep.subr.mxu0 0.0
    %265 = vmatpush1.msra.mxu0 0.0
    %266 = vmatprep.subr.mxu0 0.0
    %267 = vmatpush1.msra.mxu0 0.0
    %268 = vmatprep.subr.mxu0 0.0
    %269 = vmatpush1.msra.mxu0 0.0
    %270 = vmatprep.subr.mxu0 0.0
    %271 = vmatpush1.msra.mxu0 0.0
    %272 = vmatprep.subr.mxu0 0.0
    %273 = vmatpush1.msra.mxu0 0.0
    %274 = vmatprep.subr.mxu0 0.0
    %275 = vmatpush1.msra.mxu0 0.0
    %276 = vmatprep.subr.mxu0 0.0
    %277 = vmatpush1.msra.mxu0 0.0
    %278 = vmatprep.subr.mxu0 0.0
    %279 = vmatpush1.msra.mxu0 0.0
    %280 = vmatprep.subr.mxu0 0.0
    %281 = vmatpush1.msra.mxu0 0.0
    %282 = vmatprep.mubr.f32.mxu0 0.0
    %283 = vmatmul.mubr.f32.gmra.mrb[0].mxu0 %v76
    %v284 = vpop.f32.mrb[0].mxu0
    %v285 = vadd.f32 0.0, %v284
    %v286 = vpop.f32.mrb[0].mxu0
    %287 = vmatprep.mubr.f32.mxu0 0.0
    %288 = vmatmul.mubr.f32.gmra.mrb[0].mxu0 %v79
    %v289 = vpop.f32.mrb[0].mxu0
    %v290 = vadd.f32 0.0, %v289
    %v291 = vpop.f32.mrb[0].mxu0
    %292 = vmatprep.mubr.f32.mxu0 0.0
    %293 = vmatmul.mubr.f32.gmra.mrb[0].mxu0 %v82
    %v294 = vpop.f32.mrb[0].mxu0
    %v295 = vadd.f32 0.0, %v294
    %v296 = vpop.f32.mrb[0].mxu0
    %297 = vmatprep.mubr.f32.mxu0 0.0
    %298 = vmatmul.mubr.f32.gmra.mrb[0].mxu0 %v85
    %v299 = vpop.f32.mrb[0].mxu0
    %v300 = vadd.f32 0.0, %v299
    %v301 = vpop.f32.mrb[0].mxu0
    %302 = vdwg.mxu0
    %s303 = scalar_lea.vmem %s2, 64
    %v304 = vld [vmem:[%s303] sm:$0xff]
    %v305 = vld [vmem:[%s303 + $0x8] sm:$0xff]
    %v306 = vld [vmem:[%s303 + $0x10] sm:$0xff]
    %v307 = vld [vmem:[%s303 + $0x18] sm:$0xff]
    %v308 = vld [vmem:[%s303 + $0x20] sm:$0xff]
    %v309 = vld [vmem:[%s303 + $0x28] sm:$0xff]
    %v310 = vld [vmem:[%s303 + $0x30] sm:$0xff]
    %v311 = vld [vmem:[%s303 + $0x38] sm:$0xff]
    %vm312 = vcmask 261120
    %v314 = vsel %vm312, %v304, 0
    %v317 = vsel %vm312, %v305, 0
    %v320 = vsel %vm312, %v306, 0
    %v323 = vsel %vm312, %v307, 0
    %v326 = vsel %vm312, %v308, 0
    %v329 = vsel %vm312, %v309, 0
    %v332 = vsel %vm312, %v310, 0
    %v335 = vsel %vm312, %v311, 0
    %337 = vmatprep.subr.mxu0 0.0
    %338 = vmatpush1.msra.mxu0 %v285
    %339 = vmatprep.subr.mxu0 0.0
    %340 = vmatpush1.msra.mxu0 %v290
    %341 = vmatprep.subr.mxu0 0.0
    %342 = vmatpush1.msra.mxu0 %v295
    %343 = vmatprep.subr.mxu0 0.0
    %344 = vmatpush1.msra.mxu0 %v300
    %345 = vmatprep.subr.mxu0 0.0
    %346 = vmatpush1.msra.mxu0 0.0
    %347 = vmatprep.subr.mxu0 0.0
    %348 = vmatpush1.msra.mxu0 0.0
    %349 = vmatprep.subr.mxu0 0.0
    %350 = vmatpush1.msra.mxu0 0.0
    %351 = vmatprep.subr.mxu0 0.0
    %352 = vmatpush1.msra.mxu0 0.0
    %353 = vmatprep.subr.mxu0 0.0
    %354 = vmatpush1.msra.mxu0 0.0
    %355 = vmatprep.subr.mxu0 0.0
    %356 = vmatpush1.msra.mxu0 0.0
    %357 = vmatprep.subr.mxu0 0.0
    %358 = vmatpush1.msra.mxu0 0.0
    %359 = vmatprep.subr.mxu0 0.0
    %360 = vmatpush1.msra.mxu0 0.0
    %361 = vmatprep.subr.mxu0 0.0
    %362 = vmatpush1.msra.mxu0 0.0
    %363 = vmatprep.subr.mxu0 0.0
    %364 = vmatpush1.msra.mxu0 0.0
    %365 = vmatprep.subr.mxu0 0.0
    %366 = vmatpush1.msra.mxu0 0.0
    %367 = vmatprep.subr.mxu0 0.0
    %368 = vmatpush1.msra.mxu0 0.0
    %369 = vmatprep.subr.mxu0 0.0
    %370 = vmatpush1.msra.mxu0 0.0
    %371 = vmatprep.subr.mxu0 0.0
    %372 = vmatpush1.msra.mxu0 0.0
    %373 = vmatprep.subr.mxu0 0.0
    %374 = vmatpush1.msra.mxu0 0.0
    %375 = vmatprep.subr.mxu0 0.0
    %376 = vmatpush1.msra.mxu0 0.0
    %377 = vmatprep.subr.mxu0 0.0
    %378 = vmatpush1.msra.mxu0 0.0
    %379 = vmatprep.subr.mxu0 0.0
    %380 = vmatpush1.msra.mxu0 0.0
    %381 = vmatprep.subr.mxu0 0.0
    %382 = vmatpush1.msra.mxu0 0.0
    %383 = vmatprep.subr.mxu0 0.0
    %384 = vmatpush1.msra.mxu0 0.0
    %385 = vmatprep.subr.mxu0 0.0
    %386 = vmatpush1.msra.mxu0 0.0
    %387 = vmatprep.subr.mxu0 0.0
    %388 = vmatpush1.msra.mxu0 0.0
    %389 = vmatprep.subr.mxu0 0.0
    %390 = vmatpush1.msra.mxu0 0.0
    %391 = vmatprep.subr.mxu0 0.0
    %392 = vmatpush1.msra.mxu0 0.0
    %393 = vmatprep.subr.mxu0 0.0
    %394 = vmatpush1.msra.mxu0 0.0
    %395 = vmatprep.subr.mxu0 0.0
    %396 = vmatpush1.msra.mxu0 0.0
    %397 = vmatprep.subr.mxu0 0.0
    %398 = vmatpush1.msra.mxu0 0.0
    %399 = vmatprep.subr.mxu0 0.0
    %400 = vmatpush1.msra.mxu0 0.0
    %401 = vmatprep.mubr.f32.mxu0 0.0
    %402 = vmatmul.mubr.f32.gmra.mrb[0].mxu0 %v314
    %v403 = vpop.f32.mrb[0].mxu0
    %v404 = vadd.f32 0.0, %v403
    %v405 = vpop.f32.mrb[0].mxu0
    %406 = vmatprep.mubr.f32.mxu0 0.0
    %407 = vmatmul.mubr.f32.gmra.mrb[0].mxu0 %v317
    %v408 = vpop.f32.mrb[0].mxu0
    %v409 = vadd.f32 0.0, %v408
    %v410 = vpop.f32.mrb[0].mxu0
    %411 = vmatprep.mubr.f32.mxu0 0.0
    %412 = vmatmul.mubr.f32.gmra.mrb[0].mxu0 %v320
    %v413 = vpop.f32.mrb[0].mxu0
    %v414 = vadd.f32 0.0, %v413
    %v415 = vpop.f32.mrb[0].mxu0
    %416 = vmatprep.mubr.f32.mxu0 0.0
    %417 = vmatmul.mubr.f32.gmra.mrb[0].mxu0 %v323
    %v418 = vpop.f32.mrb[0].mxu0
    %v419 = vadd.f32 0.0, %v418
    %v420 = vpop.f32.mrb[0].mxu0
    %421 = vmatprep.mubr.f32.mxu0 0.0
    %422 = vmatmul.mubr.f32.gmra.mrb[0].mxu0 %v326
    %v423 = vpop.f32.mrb[0].mxu0
    %v424 = vadd.f32 0.0, %v423
    %v425 = vpop.f32.mrb[0].mxu0
    %426 = vmatprep.mubr.f32.mxu0 0.0
    %427 = vmatmul.mubr.f32.gmra.mrb[0].mxu0 %v329
    %v428 = vpop.f32.mrb[0].mxu0
    %v429 = vadd.f32 0.0, %v428
    %v430 = vpop.f32.mrb[0].mxu0
    %431 = vmatprep.mubr.f32.mxu0 0.0
    %432 = vmatmul.mubr.f32.gmra.mrb[0].mxu0 %v332
    %v433 = vpop.f32.mrb[0].mxu0
    %v434 = vadd.f32 0.0, %v433
    %v435 = vpop.f32.mrb[0].mxu0
    %436 = vmatprep.mubr.f32.mxu0 0.0
    %437 = vmatmul.mubr.f32.gmra.mrb[0].mxu0 %v335
    %v438 = vpop.f32.mrb[0].mxu0
    %v439 = vadd.f32 0.0, %v438
    %v440 = vpop.f32.mrb[0].mxu0
    %441 = vdwg.mxu0
    %v443 = vsel %vm312, %v176, 0
    %v446 = vsel %vm312, %v177, 0
    %v449 = vsel %vm312, %v178, 0
    %v452 = vsel %vm312, %v179, 0
    %v455 = vsel %vm312, %v180, 0
    %v458 = vsel %vm312, %v181, 0
    %v461 = vsel %vm312, %v182, 0
    %v464 = vsel %vm312, %v183, 0
    %466 = vmatprep.subr.mxu0 0.0
    %467 = vmatpush1.msra.mxu0 %v158
    %468 = vmatprep.subr.mxu0 0.0
    %469 = vmatpush1.msra.mxu0 %v163
    %470 = vmatprep.subr.mxu0 0.0
    %471 = vmatpush1.msra.mxu0 %v168
    %472 = vmatprep.subr.mxu0 0.0
    %473 = vmatpush1.msra.mxu0 %v173
    %474 = vmatprep.subr.mxu0 0.0
    %475 = vmatpush1.msra.mxu0 0.0
    %476 = vmatprep.subr.mxu0 0.0
    %477 = vmatpush1.msra.mxu0 0.0
    %478 = vmatprep.subr.mxu0 0.0
    %479 = vmatpush1.msra.mxu0 0.0
    %480 = vmatprep.subr.mxu0 0.0
    %481 = vmatpush1.msra.mxu0 0.0
    %482 = vmatprep.subr.mxu0 0.0
    %483 = vmatpush1.msra.mxu0 0.0
    %484 = vmatprep.subr.mxu0 0.0
    %485 = vmatpush1.msra.mxu0 0.0
    %486 = vmatprep.subr.mxu0 0.0
    %487 = vmatpush1.msra.mxu0 0.0
    %488 = vmatprep.subr.mxu0 0.0
    %489 = vmatpush1.msra.mxu0 0.0
    %490 = vmatprep.subr.mxu0 0.0
    %491 = vmatpush1.msra.mxu0 0.0
    %492 = vmatprep.subr.mxu0 0.0
    %493 = vmatpush1.msra.mxu0 0.0
    %494 = vmatprep.subr.mxu0 0.0
    %495 = vmatpush1.msra.mxu0 0.0
    %496 = vmatprep.subr.mxu0 0.0
    %497 = vmatpush1.msra.mxu0 0.0
    %498 = vmatprep.subr.mxu0 0.0
    %499 = vmatpush1.msra.mxu0 0.0
    %500 = vmatprep.subr.mxu0 0.0
    %501 = vmatpush1.msra.mxu0 0.0
    %502 = vmatprep.subr.mxu0 0.0
    %503 = vmatpush1.msra.mxu0 0.0
    %504 = vmatprep.subr.mxu0 0.0
    %505 = vmatpush1.msra.mxu0 0.0
    %506 = vmatprep.subr.mxu0 0.0
    %507 = vmatpush1.msra.mxu0 0.0
    %508 = vmatprep.subr.mxu0 0.0
    %509 = vmatpush1.msra.mxu0 0.0
    %510 = vmatprep.subr.mxu0 0.0
    %511 = vmatpush1.msra.mxu0 0.0
    %512 = vmatprep.subr.mxu0 0.0
    %513 = vmatpush1.msra.mxu0 0.0
    %514 = vmatprep.subr.mxu0 0.0
    %515 = vmatpush1.msra.mxu0 0.0
    %516 = vmatprep.subr.mxu0 0.0
    %517 = vmatpush1.msra.mxu0 0.0
    %518 = vmatprep.subr.mxu0 0.0
    %519 = vmatpush1.msra.mxu0 0.0
    %520 = vmatprep.subr.mxu0 0.0
    %521 = vmatpush1.msra.mxu0 0.0
    %522 = vmatprep.subr.mxu0 0.0
    %523 = vmatpush1.msra.mxu0 0.0
    %524 = vmatprep.subr.mxu0 0.0
    %525 = vmatpush1.msra.mxu0 0.0
    %526 = vmatprep.subr.mxu0 0.0
    %527 = vmatpush1.msra.mxu0 0.0
    %528 = vmatprep.subr.mxu0 0.0
    %529 = vmatpush1.msra.mxu0 0.0
    %530 = vmatprep.mubr.f32.mxu0 0.0
    %531 = vmatmul.mubr.f32.gmra.mrb[0].mxu0 %v443
    %v532 = vpop.f32.mrb[0].mxu0
    %v533 = vadd.f32 %v404, %v532
    %v534 = vpop.f32.mrb[0].mxu0
    %535 = vmatprep.mubr.f32.mxu0 0.0
    %536 = vmatmul.mubr.f32.gmra.mrb[0].mxu0 %v446
    %v537 = vpop.f32.mrb[0].mxu0
    %v538 = vadd.f32 %v409, %v537
    %v539 = vpop.f32.mrb[0].mxu0
    %540 = vmatprep.mubr.f32.mxu0 0.0
    %541 = vmatmul.mubr.f32.gmra.mrb[0].mxu0 %v449
    %v542 = vpop.f32.mrb[0].mxu0
    %v543 = vadd.f32 %v414, %v542
    %v544 = vpop.f32.mrb[0].mxu0
    %545 = vmatprep.mubr.f32.mxu0 0.0
    %546 = vmatmul.mubr.f32.gmra.mrb[0].mxu0 %v452
    %v547 = vpop.f32.mrb[0].mxu0
    %v548 = vadd.f32 %v419, %v547
    %v549 = vpop.f32.mrb[0].mxu0
    %550 = vmatprep.mubr.f32.mxu0 0.0
    %551 = vmatmul.mubr.f32.gmra.mrb[0].mxu0 %v455
    %v552 = vpop.f32.mrb[0].mxu0
    %v553 = vadd.f32 %v424, %v552
    %v554 = vpop.f32.mrb[0].mxu0
    %555 = vmatprep.mubr.f32.mxu0 0.0
    %556 = vmatmul.mubr.f32.gmra.mrb[0].mxu0 %v458
    %v557 = vpop.f32.mrb[0].mxu0
    %v558 = vadd.f32 %v429, %v557
    %v559 = vpop.f32.mrb[0].mxu0
    %560 = vmatprep.mubr.f32.mxu0 0.0
    %561 = vmatmul.mubr.f32.gmra.mrb[0].mxu0 %v461
    %v562 = vpop.f32.mrb[0].mxu0
    %v563 = vadd.f32 %v434, %v562
    %v564 = vpop.f32.mrb[0].mxu0
    %565 = vmatprep.mubr.f32.mxu0 0.0
    %566 = vmatmul.mubr.f32.gmra.mrb[0].mxu0 %v464
    %v567 = vpop.f32.mrb[0].mxu0
    %v568 = vadd.f32 %v439, %v567
    %v569 = vpop.f32.mrb[0].mxu0
    %570 = vdwg.mxu0
    %v571 = vld [vmem:[%s0 + $0x2] sm:$0x1]
    %v572 = vlaneseq
    %v573 = vshrl.u32 %v572, 7
    %v574 = vsub.s32 0, %v573
    %v575 = vrot.slane %v571, %v574
    %vm576 = vcmp.eq.s32.totalorder %v30, %v575
    %vm577 = vcmp.eq.s32.totalorder %v31, %v575
    %vm578 = vcmp.eq.s32.totalorder %v32, %v575
    %vm579 = vcmp.eq.s32.totalorder %v33, %v575
    %vm580 = vcmp.eq.s32.totalorder %v34, %v575
    %vm581 = vcmp.eq.s32.totalorder %v35, %v575
    %vm582 = vcmp.eq.s32.totalorder %v36, %v575
    %vm583 = vcmp.eq.s32.totalorder %v37, %v575
    %vm584 = vcmp.eq.s32.totalorder %v38, %v575
    %vm585 = vcmp.eq.s32.totalorder %v39, %v575
    %vm586 = vcmp.eq.s32.totalorder %v40, %v575
    %vm587 = vcmp.eq.s32.totalorder %v41, %v575
    %vm588 = vcmp.eq.s32.totalorder %v42, %v575
    %v589 = vsel %vm576, 1.0, 0.0
    %v590 = vsel %vm577, 1.0, 0.0
    %v591 = vsel %vm578, 1.0, 0.0
    %v592 = vsel %vm579, 1.0, 0.0
    %v593 = vsel %vm580, 1.0, 0.0
    %v594 = vsel %vm581, 1.0, 0.0
    %v595 = vsel %vm582, 1.0, 0.0
    %v596 = vsel %vm583, 1.0, 0.0
    %v597 = vsel %vm584, 1.0, 0.0
    %v598 = vsel %vm585, 1.0, 0.0
    %v599 = vsel %vm586, 1.0, 0.0
    %v600 = vsel %vm587, 1.0, 0.0
    %v601 = vsel %vm588, 1.0, 0.0
    %v603 = vsel %vm87, %v601, 0
    %605 = vmatprep.subr.mxu0 0.0
    %606 = vmatpush1.msra.mxu0 %v589
    %607 = vmatprep.subr.mxu0 0.0
    %608 = vmatpush1.msra.mxu0 %v590
    %609 = vmatprep.subr.mxu0 0.0
    %610 = vmatpush1.msra.mxu0 %v591
    %611 = vmatprep.subr.mxu0 0.0
    %612 = vmatpush1.msra.mxu0 %v592
    %613 = vmatprep.subr.mxu0 0.0
    %614 = vmatpush1.msra.mxu0 %v593
    %615 = vmatprep.subr.mxu0 0.0
    %616 = vmatpush1.msra.mxu0 %v594
    %617 = vmatprep.subr.mxu0 0.0
    %618 = vmatpush1.msra.mxu0 %v595
    %619 = vmatprep.subr.mxu0 0.0
    %620 = vmatpush1.msra.mxu0 %v596
    %621 = vmatprep.subr.mxu0 0.0
    %622 = vmatpush1.msra.mxu0 %v597
    %623 = vmatprep.subr.mxu0 0.0
    %624 = vmatpush1.msra.mxu0 %v598
    %625 = vmatprep.subr.mxu0 0.0
    %626 = vmatpush1.msra.mxu0 %v599
    %627 = vmatprep.subr.mxu0 0.0
    %628 = vmatpush1.msra.mxu0 %v600
    %629 = vmatprep.subr.mxu0 0.0
    %630 = vmatpush1.msra.mxu0 %v603
    %631 = vmatprep.subr.mxu0 0.0
    %632 = vmatpush1.msra.mxu0 0.0
    %633 = vmatprep.subr.mxu0 0.0
    %634 = vmatpush1.msra.mxu0 0.0
    %635 = vmatprep.subr.mxu0 0.0
    %636 = vmatpush1.msra.mxu0 0.0
    %637 = vmatprep.subr.mxu0 0.0
    %638 = vmatpush1.msra.mxu0 0.0
    %639 = vmatprep.subr.mxu0 0.0
    %640 = vmatpush1.msra.mxu0 0.0
    %641 = vmatprep.subr.mxu0 0.0
    %642 = vmatpush1.msra.mxu0 0.0
    %643 = vmatprep.subr.mxu0 0.0
    %644 = vmatpush1.msra.mxu0 0.0
    %645 = vmatprep.subr.mxu0 0.0
    %646 = vmatpush1.msra.mxu0 0.0
    %647 = vmatprep.subr.mxu0 0.0
    %648 = vmatpush1.msra.mxu0 0.0
    %649 = vmatprep.subr.mxu0 0.0
    %650 = vmatpush1.msra.mxu0 0.0
    %651 = vmatprep.subr.mxu0 0.0
    %652 = vmatpush1.msra.mxu0 0.0
    %653 = vmatprep.subr.mxu0 0.0
    %654 = vmatpush1.msra.mxu0 0.0
    %655 = vmatprep.subr.mxu0 0.0
    %656 = vmatpush1.msra.mxu0 0.0
    %657 = vmatprep.subr.mxu0 0.0
    %658 = vmatpush1.msra.mxu0 0.0
    %659 = vmatprep.subr.mxu0 0.0
    %660 = vmatpush1.msra.mxu0 0.0
    %661 = vmatprep.subr.mxu0 0.0
    %662 = vmatpush1.msra.mxu0 0.0
    %663 = vmatprep.subr.mxu0 0.0
    %664 = vmatpush1.msra.mxu0 0.0
    %665 = vmatprep.subr.mxu0 0.0
    %666 = vmatpush1.msra.mxu0 0.0
    %667 = vmatprep.subr.mxu0 0.0
    %668 = vmatpush1.msra.mxu0 0.0
    %669 = vmatprep.mubr.f32.mxu0 0.0
    %670 = vmatmul.mubr.f32.gmra.mrb[0].mxu0 %v76
    %v671 = vpop.f32.mrb[0].mxu0
    %v672 = vadd.f32 0.0, %v671
    %v673 = vpop.f32.mrb[0].mxu0
    %674 = vmatprep.mubr.f32.mxu0 0.0
    %675 = vmatmul.mubr.f32.gmra.mrb[0].mxu0 %v79
    %v676 = vpop.f32.mrb[0].mxu0
    %v677 = vadd.f32 0.0, %v676
    %v678 = vpop.f32.mrb[0].mxu0
    %679 = vmatprep.mubr.f32.mxu0 0.0
    %680 = vmatmul.mubr.f32.gmra.mrb[0].mxu0 %v82
    %v681 = vpop.f32.mrb[0].mxu0
    %v682 = vadd.f32 0.0, %v681
    %v683 = vpop.f32.mrb[0].mxu0
    %684 = vmatprep.mubr.f32.mxu0 0.0
    %685 = vmatmul.mubr.f32.gmra.mrb[0].mxu0 %v85
    %v686 = vpop.f32.mrb[0].mxu0
    %v687 = vadd.f32 0.0, %v686
    %v688 = vpop.f32.mrb[0].mxu0
    %689 = vdwg.mxu0
    %s690 = scalar_lea.vmem %s2, 128
    %v691 = vld [vmem:[%s690] sm:$0xff]
    %v692 = vld [vmem:[%s690 + $0x8] sm:$0xff]
    %v693 = vld [vmem:[%s690 + $0x10] sm:$0xff]
    %v694 = vld [vmem:[%s690 + $0x18] sm:$0xff]
    %v695 = vld [vmem:[%s690 + $0x20] sm:$0xff]
    %v696 = vld [vmem:[%s690 + $0x28] sm:$0xff]
    %v697 = vld [vmem:[%s690 + $0x30] sm:$0xff]
    %v698 = vld [vmem:[%s690 + $0x38] sm:$0xff]
    %v700 = vsel %vm312, %v691, 0
    %v703 = vsel %vm312, %v692, 0
    %v706 = vsel %vm312, %v693, 0
    %v709 = vsel %vm312, %v694, 0
    %v712 = vsel %vm312, %v695, 0
    %v715 = vsel %vm312, %v696, 0
    %v718 = vsel %vm312, %v697, 0
    %v721 = vsel %vm312, %v698, 0
    %723 = vmatprep.subr.mxu0 0.0
    %724 = vmatpush1.msra.mxu0 %v672
    %725 = vmatprep.subr.mxu0 0.0
    %726 = vmatpush1.msra.mxu0 %v677
    %727 = vmatprep.subr.mxu0 0.0
    %728 = vmatpush1.msra.mxu0 %v682
    %729 = vmatprep.subr.mxu0 0.0
    %730 = vmatpush1.msra.mxu0 %v687
    %731 = vmatprep.subr.mxu0 0.0
    %732 = vmatpush1.msra.mxu0 0.0
    %733 = vmatprep.subr.mxu0 0.0
    %734 = vmatpush1.msra.mxu0 0.0
    %735 = vmatprep.subr.mxu0 0.0
    %736 = vmatpush1.msra.mxu0 0.0
    %737 = vmatprep.subr.mxu0 0.0
    %738 = vmatpush1.msra.mxu0 0.0
    %739 = vmatprep.subr.mxu0 0.0
    %740 = vmatpush1.msra.mxu0 0.0
    %741 = vmatprep.subr.mxu0 0.0
    %742 = vmatpush1.msra.mxu0 0.0
    %743 = vmatprep.subr.mxu0 0.0
    %744 = vmatpush1.msra.mxu0 0.0
    %745 = vmatprep.subr.mxu0 0.0
    %746 = vmatpush1.msra.mxu0 0.0
    %747 = vmatprep.subr.mxu0 0.0
    %748 = vmatpush1.msra.mxu0 0.0
    %749 = vmatprep.subr.mxu0 0.0
    %750 = vmatpush1.msra.mxu0 0.0
    %751 = vmatprep.subr.mxu0 0.0
    %752 = vmatpush1.msra.mxu0 0.0
    %753 = vmatprep.subr.mxu0 0.0
    %754 = vmatpush1.msra.mxu0 0.0
    %755 = vmatprep.subr.mxu0 0.0
    %756 = vmatpush1.msra.mxu0 0.0
    %757 = vmatprep.subr.mxu0 0.0
    %758 = vmatpush1.msra.mxu0 0.0
    %759 = vmatprep.subr.mxu0 0.0
    %760 = vmatpush1.msra.mxu0 0.0
    %761 = vmatprep.subr.mxu0 0.0
    %762 = vmatpush1.msra.mxu0 0.0
    %763 = vmatprep.subr.mxu0 0.0
    %764 = vmatpush1.msra.mxu0 0.0
    %765 = vmatprep.subr.mxu0 0.0
    %766 = vmatpush1.msra.mxu0 0.0
    %767 = vmatprep.subr.mxu0 0.0
    %768 = vmatpush1.msra.mxu0 0.0
    %769 = vmatprep.subr.mxu0 0.0
    %770 = vmatpush1.msra.mxu0 0.0
    %771 = vmatprep.subr.mxu0 0.0
    %772 = vmatpush1.msra.mxu0 0.0
    %773 = vmatprep.subr.mxu0 0.0
    %774 = vmatpush1.msra.mxu0 0.0
    %775 = vmatprep.subr.mxu0 0.0
    %776 = vmatpush1.msra.mxu0 0.0
    %777 = vmatprep.subr.mxu0 0.0
    %778 = vmatpush1.msra.mxu0 0.0
    %779 = vmatprep.subr.mxu0 0.0
    %780 = vmatpush1.msra.mxu0 0.0
    %781 = vmatprep.subr.mxu0 0.0
    %782 = vmatpush1.msra.mxu0 0.0
    %783 = vmatprep.subr.mxu0 0.0
    %784 = vmatpush1.msra.mxu0 0.0
    %785 = vmatprep.subr.mxu0 0.0
    %786 = vmatpush1.msra.mxu0 0.0
    %787 = vmatprep.mubr.f32.mxu0 0.0
    %788 = vmatmul.mubr.f32.gmra.mrb[0].mxu0 %v700
    %v789 = vpop.f32.mrb[0].mxu0
    %v790 = vadd.f32 0.0, %v789
    %v791 = vpop.f32.mrb[0].mxu0
    %792 = vmatprep.mubr.f32.mxu0 0.0
    %793 = vmatmul.mubr.f32.gmra.mrb[0].mxu0 %v703
    %v794 = vpop.f32.mrb[0].mxu0
    %v795 = vadd.f32 0.0, %v794
    %v796 = vpop.f32.mrb[0].mxu0
    %797 = vmatprep.mubr.f32.mxu0 0.0
    %798 = vmatmul.mubr.f32.gmra.mrb[0].mxu0 %v706
    %v799 = vpop.f32.mrb[0].mxu0
    %v800 = vadd.f32 0.0, %v799
    %v801 = vpop.f32.mrb[0].mxu0
    %802 = vmatprep.mubr.f32.mxu0 0.0
    %803 = vmatmul.mubr.f32.gmra.mrb[0].mxu0 %v709
    %v804 = vpop.f32.mrb[0].mxu0
    %v805 = vadd.f32 0.0, %v804
    %v806 = vpop.f32.mrb[0].mxu0
    %807 = vmatprep.mubr.f32.mxu0 0.0
    %808 = vmatmul.mubr.f32.gmra.mrb[0].mxu0 %v712
    %v809 = vpop.f32.mrb[0].mxu0
    %v810 = vadd.f32 0.0, %v809
    %v811 = vpop.f32.mrb[0].mxu0
    %812 = vmatprep.mubr.f32.mxu0 0.0
    %813 = vmatmul.mubr.f32.gmra.mrb[0].mxu0 %v715
    %v814 = vpop.f32.mrb[0].mxu0
    %v815 = vadd.f32 0.0, %v814
    %v816 = vpop.f32.mrb[0].mxu0
    %817 = vmatprep.mubr.f32.mxu0 0.0
    %818 = vmatmul.mubr.f32.gmra.mrb[0].mxu0 %v718
    %v819 = vpop.f32.mrb[0].mxu0
    %v820 = vadd.f32 0.0, %v819
    %v821 = vpop.f32.mrb[0].mxu0
    %822 = vmatprep.mubr.f32.mxu0 0.0
    %823 = vmatmul.mubr.f32.gmra.mrb[0].mxu0 %v721
    %v824 = vpop.f32.mrb[0].mxu0
    %v825 = vadd.f32 0.0, %v824
    %v826 = vpop.f32.mrb[0].mxu0
    %827 = vdwg.mxu0
    %v828 = vadd.f32 %v533, %v790
    %v829 = vadd.f32 %v538, %v795
    %v830 = vadd.f32 %v543, %v800
    %v831 = vadd.f32 %v548, %v805
    %v832 = vadd.f32 %v553, %v810
    %v833 = vadd.f32 %v558, %v815
    %v834 = vadd.f32 %v563, %v820
    %v835 = vadd.f32 %v568, %v825
    %v836 = vld [vmem:[%s3] sm:$0xff]
    %v837 = vld [vmem:[%s3 + $0x8] sm:$0xff]
    %v838 = vld [vmem:[%s3 + $0x10] sm:$0xff]
    %v839 = vld [vmem:[%s3 + $0x18] sm:$0xff]
    %v840 = vld [vmem:[%s3 + $0x20] sm:$0xff]
    %v841 = vld [vmem:[%s3 + $0x28] sm:$0xff]
    %v842 = vld [vmem:[%s3 + $0x30] sm:$0xff]
    %v843 = vld [vmem:[%s3 + $0x38] sm:$0xff]
    %845 = vset.pattern.permute.xlu0 0
    %846 = vperm.xlu0 %845, %v836
    %v847 = vpop.permute.xlu0 %846
    %850 = vset.pattern.permute.xlu0 0
    %851 = vperm.xlu0 %850, %v837
    %v852 = vpop.permute.xlu0 %851
    %855 = vset.pattern.permute.xlu0 0
    %856 = vperm.xlu0 %855, %v838
    %v857 = vpop.permute.xlu0 %856
    %860 = vset.pattern.permute.xlu0 0
    %861 = vperm.xlu0 %860, %v839
    %v862 = vpop.permute.xlu0 %861
    %865 = vset.pattern.permute.xlu0 0
    %866 = vperm.xlu0 %865, %v840
    %v867 = vpop.permute.xlu0 %866
    %870 = vset.pattern.permute.xlu0 0
    %871 = vperm.xlu0 %870, %v841
    %v872 = vpop.permute.xlu0 %871
    %875 = vset.pattern.permute.xlu0 0
    %876 = vperm.xlu0 %875, %v842
    %v877 = vpop.permute.xlu0 %876
    %880 = vset.pattern.permute.xlu0 0
    %881 = vperm.xlu0 %880, %v843
    %v882 = vpop.permute.xlu0 %881
    %v884 = vadd.f32 %v828, %v847
    %v885 = vadd.f32 %v829, %v852
    %v886 = vadd.f32 %v830, %v857
    %v887 = vadd.f32 %v831, %v862
    %v888 = vadd.f32 %v832, %v867
    %v889 = vadd.f32 %v833, %v872
    %v890 = vadd.f32 %v834, %v877
    %v891 = vadd.f32 %v835, %v882
    %v892 = vmax.f32 %v884, 0.0
    %v893 = vmax.f32 %v885, 0.0
    %v894 = vmax.f32 %v886, 0.0
    %v895 = vmax.f32 %v887, 0.0
    %v896 = vmax.f32 %v888, 0.0
    %v897 = vmax.f32 %v889, 0.0
    %v898 = vmax.f32 %v890, 0.0
    %v899 = vmax.f32 %v891, 0.0
    %v900 = vld [vmem:[%s4] sm:$0xff]
    %v901 = vld [vmem:[%s4 + $0x8] sm:$0xff]
    %v902 = vld [vmem:[%s4 + $0x10] sm:$0xff]
    %v903 = vld [vmem:[%s4 + $0x18] sm:$0xff]
    %v904 = vld [vmem:[%s4 + $0x20] sm:$0xff]
    %v905 = vld [vmem:[%s4 + $0x28] sm:$0xff]
    %v906 = vld [vmem:[%s4 + $0x30] sm:$0xff]
    %v907 = vld [vmem:[%s4 + $0x38] sm:$0xff]
    %909 = vset.pattern.permute.xlu0 0
    %910 = vperm.xlu0 %909, %v900
    %v911 = vpop.permute.xlu0 %910
    %914 = vset.pattern.permute.xlu0 0
    %915 = vperm.xlu0 %914, %v901
    %v916 = vpop.permute.xlu0 %915
    %919 = vset.pattern.permute.xlu0 0
    %920 = vperm.xlu0 %919, %v902
    %v921 = vpop.permute.xlu0 %920
    %924 = vset.pattern.permute.xlu0 0
    %925 = vperm.xlu0 %924, %v903
    %v926 = vpop.permute.xlu0 %925
    %929 = vset.pattern.permute.xlu0 0
    %930 = vperm.xlu0 %929, %v904
    %v931 = vpop.permute.xlu0 %930
    %934 = vset.pattern.permute.xlu0 0
    %935 = vperm.xlu0 %934, %v905
    %v936 = vpop.permute.xlu0 %935
    %939 = vset.pattern.permute.xlu0 0
    %940 = vperm.xlu0 %939, %v906
    %v941 = vpop.permute.xlu0 %940
    %944 = vset.pattern.permute.xlu0 0
    %945 = vperm.xlu0 %944, %v907
    %v946 = vpop.permute.xlu0 %945
    %v948 = vmul.f32 %v892, %v911
    %v949 = vmul.f32 %v893, %v916
    %v950 = vmul.f32 %v894, %v921
    %v951 = vmul.f32 %v895, %v926
    %v952 = vmul.f32 %v896, %v931
    %v953 = vmul.f32 %v897, %v936
    %v954 = vmul.f32 %v898, %v941
    %v955 = vmul.f32 %v899, %v946
    %v956 = vadd.f32 %v948, %v949
    %v957 = vadd.f32 %v956, %v950
    %v958 = vadd.f32 %v957, %v951
    %v959 = vadd.f32 %v958, %v952
    %v960 = vadd.f32 %v959, %v953
    %v961 = vadd.f32 %v960, %v954
    %v962 = vadd.f32 %v961, %v955
    %v963 = vrot.slane %v962, 4
    %v964 = vadd.f32 %v962, %v963
    %v965 = vrot.slane %v964, 2
    %v966 = vadd.f32 %v964, %v965
    %v967 = vrot.slane %v966, 1
    %v968 = vadd.f32 %v966, %v967
    %s969 = sld [smem:[#allocation2]]
    %v970 = vstv %s969
    %v971 = vadd.f32 %v968, %v970
    %v972 = vxor.u32 %v971, 2147483648
    %v973 = vmul.f32 %v972, 1.442695
    %v974 = vpow.pop %v973
    %v975 = vadd.f32 %v974, 1.0
    %v976 = vrcp.pop %v975
    %v977 = vmul.f32 1.0, %v976
    %978 = vst [vmem:[#allocation3] sm:$0x1] %v977
    // Predicated region
    $region26: #{tpu_custom_call.1} parent=1 // pred_check
      _
    $region27: #{tpu_custom_call.1} parent=1 // pred_check_branch
      %980 = sbr.rel (0) target = $region29
    $region28: #{tpu_custom_call.1} parent=1 // pred_region
      %s982 = ssub.s32 16, 16
      %983 = vsyncadd [#allocation4], %s982
      %s985 = sshll.u32 [#allocation3], 4
      %s986 = int_to_ptr.vmem [resolvable:$true] %s985
      %988 = dma.vmem_to_hbm [thread:$0]  %s986, 16, %s6, [#allocation4]
    $region29: #{tpu_custom_call.1} parent=1 // pred_fallthru
      _
    // Predicated region
    $region30: #{tpu_custom_call.1} parent=1 // pred_check
      _
    $region31: #{tpu_custom_call.1} parent=1 // pred_check_branch
      %990 = sbr.rel (0) target = $region33
    $region32: #{tpu_custom_call.1} parent=1 // pred_region
      %991 = dma.done [#allocation4], 16
    $region33: #{tpu_custom_call.1} parent=1 // pred_fallthru
      _
    %992 = vsyncpa [#allocation4], 1

</llo_original>
